<compile_context>
chip_gen: v7x
topology: tpu7x:2x2x1
jax: 0.10.0
libtpu: 0.0.40
codegen_flags: <defaults>
</compile_context>

<pallas_src>
import jax
import jax.numpy as jnp
from jax.experimental import pallas as pl
from jax.experimental.pallas import tpu as pltpu

# Small, TPU-friendly synthetic sizes (stand-ins for BERT's 768 / real vocab).
HIDDEN = 128        # stands in for BERTHSSIZE = 768
MAXTOKS = 4
SEQ = 8             # sentence length (number of BERT hidden-state rows)
NUM_CLASSES = 8     # stands in for len(classes)
C_PAD = 128         # classes padded to a full 128-lane tile
K_DIM = MAXTOKS * HIDDEN
B_TILE = 8          # batch rows per grid step (multiple of 8 sublanes)


def _classifier_kernel(idx_ref, nvalid_ref, embs_ref, w_ref, b_ref, out_ref):
    """One-hot gather + fused [Bt,512]@[512,128] matmul + bias + masked softmax."""
    idx = idx_ref[...]            # [Bt, MAXTOKS] int32
    nvalid = nvalid_ref[...]      # [Bt, 1]       int32
    embs = embs_ref[...]          # [Bt, SEQ, HIDDEN] f32

    seq_iota = jax.lax.broadcasted_iota(jnp.int32, (B_TILE, SEQ), 1)

    # Vectorized gather: for slot m, select row idx[b, m] iff m < nvalid[b].
    # Padded / out-of-range slots select nothing -> zero row (matches torch.zeros).
    slots = []
    for m in range(MAXTOKS):
        sel = (seq_iota == idx[:, m:m + 1]) & (nvalid > m)       # [Bt, SEQ]
        sel_f = sel.astype(jnp.float32)[:, :, None]              # [Bt, SEQ, 1]
        slots.append(jnp.sum(embs * sel_f, axis=1))              # [Bt, HIDDEN]
    x = jnp.concatenate(slots, axis=-1)                          # [Bt, K_DIM]

    # Single fused contraction on the MXU: bf16 operands, f32 accumulation.
    logits = jnp.dot(x.astype(jnp.bfloat16), w_ref[...],
                     preferred_element_type=jnp.float32) + b_ref[...]   # [Bt, C_PAD]

    # Softmax over the real class lanes only (padded lanes masked out).
    lane = jax.lax.broadcasted_iota(jnp.int32, logits.shape, 1)
    logits = jnp.where(lane < NUM_CLASSES, logits, jnp.float32(-1e30))
    mmax = jnp.max(logits, axis=-1, keepdims=True)
    e = jnp.exp(logits - mmax)
    denom = jnp.sum(e, axis=-1, keepdims=True)
    out_ref[...] = e * pl.reciprocal(denom, approx=True)


def bert_hidden_state_classifier(embs, w_flat, b, token_idxs, num_valid):
    """
    embs       : [B, SEQ, HIDDEN] float32  (per-sentence hidden states, layer L)
    w_flat     : [MAXTOKS*HIDDEN, NUM_CLASSES] float32 (torch Linear weight.T,
                 token-major concat order)
    b          : [NUM_CLASSES] float32
    token_idxs : [B, MAXTOKS] int32 (padded; only first num_valid[b] used)
    num_valid  : [B] int32
    returns    : [B, NUM_CLASSES] softmax probabilities (float32)
    """
    B = embs.shape[0]
    assert B % B_TILE == 0, "batch must be a multiple of B_TILE"

    idx = token_idxs.astype(jnp.int32)
    nvalid = num_valid.astype(jnp.int32).reshape(B, 1)
    # Lane-dense, zero-padded weight/bias; bf16 weights for the MXU.
    w_pad = (jnp.zeros((K_DIM, C_PAD), jnp.float32)
             .at[:, :NUM_CLASSES].set(w_flat)).astype(jnp.bfloat16)
    b_pad = jnp.zeros((1, C_PAD), jnp.float32).at[:, :NUM_CLASSES].set(
        b.reshape(1, NUM_CLASSES))

    out = pl.pallas_call(
        _classifier_kernel,
        out_shape=jax.ShapeDtypeStruct((B, C_PAD), jnp.float32),
        grid=(B // B_TILE,),
        in_specs=[
            pl.BlockSpec((B_TILE, MAXTOKS), lambda i: (i, 0)),         # token idxs
            pl.BlockSpec((B_TILE, 1), lambda i: (i, 0)),               # num_valid
            pl.BlockSpec((B_TILE, SEQ, HIDDEN), lambda i: (i, 0, 0)),  # hidden states
            pl.BlockSpec((K_DIM, C_PAD), lambda i: (0, 0)),            # weights (resident)
            pl.BlockSpec((1, C_PAD), lambda i: (0, 0)),                # bias (resident)
        ],
        out_specs=pl.BlockSpec((B_TILE, C_PAD), lambda i: (i, 0)),
        compiler_params=pltpu.CompilerParams(
            dimension_semantics=("parallel",)),   # batch axis -> both TCs on v7x
    )(idx, nvalid, embs, w_pad, b_pad)
    return out[:, :NUM_CLASSES]


def _reference(embs, w_flat, b, token_idxs, num_valid):
    """Pure-JAX f32 reference of the PyTorch forward (gather/pad + linear + softmax)."""
    gathered = jnp.take_along_axis(embs, token_idxs[:, :, None], axis=1)   # [B,M,H]
    mask = (jnp.arange(MAXTOKS)[None, :] < num_valid[:, None])[:, :, None]
    x = jnp.where(mask, gathered, 0.0).reshape(embs.shape[0], -1)          # [B,M*H]
    logits = x @ w_flat + b
    return jax.nn.softmax(logits, axis=-1)


if __name__ == "__main__":
    key = jax.random.PRNGKey(0)
    k_embs, k_w, k_b, k_idx, k_nv = jax.random.split(key, 5)

    B = 16  # batch of sentences processed per pallas_call

    # Synthetic "BERT hidden states" for B sentences, [B, SEQ, HIDDEN].
    embs = jax.random.normal(k_embs, (B, SEQ, HIDDEN), dtype=jnp.float32)

    # Deterministic nn.Linear-style init: U(-1/sqrt(fan_in), 1/sqrt(fan_in)).
    bound = 1.0 / (K_DIM ** 0.5)
    w_flat = jax.random.uniform(k_w, (K_DIM, NUM_CLASSES),
                                minval=-bound, maxval=bound, dtype=jnp.float32)
    b = jax.random.uniform(k_b, (NUM_CLASSES,),
                           minval=-bound, maxval=bound, dtype=jnp.float32)

    # Noun token indices per sentence + per-sentence valid-token counts.
    token_idxs = jax.random.randint(k_idx, (B, MAXTOKS), 0, SEQ, dtype=jnp.int32)
    num_valid = jax.random.randint(k_nv, (B,), 1, MAXTOKS + 1, dtype=jnp.int32)

    probs = bert_hidden_state_classifier(embs, w_flat, b, token_idxs, num_valid)
    probs = jax.block_until_ready(probs)

    ref = _reference(embs, w_flat, b, token_idxs, num_valid)
    assert probs.shape == (B, NUM_CLASSES)
    # bf16 MXU operands + approximate reciprocal -> loose-but-meaningful tolerance.
    max_err = float(jnp.max(jnp.abs(probs - ref)))
    assert jnp.allclose(probs, ref, atol=3e-2, rtol=0.0), max_err
    assert jnp.allclose(jnp.sum(probs, axis=-1), 1.0, atol=1e-2)

    print("KERNEL_OK")
</pallas_src>

<mosaic_0001>
module attributes {stable_mosaic.version = 11 : i64} {
  func.func @_classifier_kernel(%arg0: i32, %arg1: memref<8x4xi32, #tpu.memory_space<vmem>>, %arg2: memref<8x1xi32, #tpu.memory_space<vmem>>, %arg3: memref<8x8x128xf32, #tpu.memory_space<vmem>>, %arg4: memref<512x128xbf16, #tpu.memory_space<vmem>>, %arg5: memref<1x128xf32, #tpu.memory_space<vmem>>, %arg6: memref<8x128xf32, #tpu.memory_space<vmem>>) attributes {dimension_semantics = [#tpu.dimension_semantics<parallel>], iteration_bounds = array<i64: 2>, scalar_prefetch = 0 : i64, scratch_operands = 0 : i64, tpu.core_type = #tpu.core_type<tc>, window_params = [{transform_indices = @transform_0, window_bounds = array<i64: 8, 4>}, {transform_indices = @transform_1, window_bounds = array<i64: 8, 1>}, {transform_indices = @transform_2, window_bounds = array<i64: 8, 8, 128>}, {pipeline_mode = #tpu.pipeline_mode<synchronous>, transform_indices = @transform_3, window_bounds = array<i64: 512, 128>}, {pipeline_mode = #tpu.pipeline_mode<synchronous>, transform_indices = @transform_4, window_bounds = array<i64: 1, 128>}, {transform_indices = @transform_5, window_bounds = array<i64: 8, 128>}]} {
    %c0 = arith.constant 0 : index
    %c0_0 = arith.constant 0 : index
    %0 = vector.load %arg1[%c0, %c0_0] : memref<8x4xi32, #tpu.memory_space<vmem>>, vector<8x4xi32>
    %c0_1 = arith.constant 0 : index
    %c0_2 = arith.constant 0 : index
    %1 = vector.load %arg2[%c0_1, %c0_2] : memref<8x1xi32, #tpu.memory_space<vmem>>, vector<8x1xi32>
    %c0_3 = arith.constant 0 : index
    %c0_4 = arith.constant 0 : index
    %c0_5 = arith.constant 0 : index
    %2 = vector.load %arg3[%c0_3, %c0_4, %c0_5] : memref<8x8x128xf32, #tpu.memory_space<vmem>>, vector<8x8x128xf32>
    %3 = tpu.iota {dimensions = array<i32: 1>} : vector<8x8xi32>
    %4 = vector.extract_strided_slice %0 {offsets = [0, 0], sizes = [8, 1], strides = [1, 1]} : vector<8x4xi32> to vector<8x1xi32>
    %5 = vector.broadcast %4 : vector<8x1xi32> to vector<8x8xi32>
    %6 = arith.cmpi eq, %3, %5 : vector<8x8xi32>
    %c0_i32 = arith.constant 0 : i32
    %7 = vector.broadcast %c0_i32 : i32 to vector<8x1xi32>
    %8 = arith.cmpi sgt, %1, %7 : vector<8x1xi32>
    %9 = vector.broadcast %8 : vector<8x1xi1> to vector<8x8xi1>
    %10 = arith.andi %6, %9 : vector<8x8xi1>
    %11 = arith.extui %10 : vector<8x8xi1> to vector<8x8xi32>
    %12 = arith.sitofp %11 : vector<8x8xi32> to vector<8x8xf32>
    %13 = vector.shape_cast %12 : vector<8x8xf32> to vector<8x8x1xf32>
    %14 = vector.broadcast %13 : vector<8x8x1xf32> to vector<8x8x128xf32>
    %15 = arith.mulf %2, %14 : vector<8x8x128xf32>
    %cst = arith.constant dense<0.000000e+00> : vector<8x128xf32>
    %16 = vector.multi_reduction <add>, %15, %cst [1] : vector<8x8x128xf32> to vector<8x128xf32>
    %17 = vector.extract_strided_slice %0 {offsets = [0, 1], sizes = [8, 1], strides = [1, 1]} : vector<8x4xi32> to vector<8x1xi32>
    %18 = vector.broadcast %17 : vector<8x1xi32> to vector<8x8xi32>
    %19 = arith.cmpi eq, %3, %18 : vector<8x8xi32>
    %c1_i32 = arith.constant 1 : i32
    %20 = vector.broadcast %c1_i32 : i32 to vector<8x1xi32>
    %21 = arith.cmpi sgt, %1, %20 : vector<8x1xi32>
    %22 = vector.broadcast %21 : vector<8x1xi1> to vector<8x8xi1>
    %23 = arith.andi %19, %22 : vector<8x8xi1>
    %24 = arith.extui %23 : vector<8x8xi1> to vector<8x8xi32>
    %25 = arith.sitofp %24 : vector<8x8xi32> to vector<8x8xf32>
    %26 = vector.shape_cast %25 : vector<8x8xf32> to vector<8x8x1xf32>
    %27 = vector.broadcast %26 : vector<8x8x1xf32> to vector<8x8x128xf32>
    %28 = arith.mulf %2, %27 : vector<8x8x128xf32>
    %cst_6 = arith.constant dense<0.000000e+00> : vector<8x128xf32>
    %29 = vector.multi_reduction <add>, %28, %cst_6 [1] : vector<8x8x128xf32> to vector<8x128xf32>
    %30 = vector.extract_strided_slice %0 {offsets = [0, 2], sizes = [8, 1], strides = [1, 1]} : vector<8x4xi32> to vector<8x1xi32>
    %31 = vector.broadcast %30 : vector<8x1xi32> to vector<8x8xi32>
    %32 = arith.cmpi eq, %3, %31 : vector<8x8xi32>
    %c2_i32 = arith.constant 2 : i32
    %33 = vector.broadcast %c2_i32 : i32 to vector<8x1xi32>
    %34 = arith.cmpi sgt, %1, %33 : vector<8x1xi32>
    %35 = vector.broadcast %34 : vector<8x1xi1> to vector<8x8xi1>
    %36 = arith.andi %32, %35 : vector<8x8xi1>
    %37 = arith.extui %36 : vector<8x8xi1> to vector<8x8xi32>
    %38 = arith.sitofp %37 : vector<8x8xi32> to vector<8x8xf32>
    %39 = vector.shape_cast %38 : vector<8x8xf32> to vector<8x8x1xf32>
    %40 = vector.broadcast %39 : vector<8x8x1xf32> to vector<8x8x128xf32>
    %41 = arith.mulf %2, %40 : vector<8x8x128xf32>
    %cst_7 = arith.constant dense<0.000000e+00> : vector<8x128xf32>
    %42 = vector.multi_reduction <add>, %41, %cst_7 [1] : vector<8x8x128xf32> to vector<8x128xf32>
    %43 = vector.extract_strided_slice %0 {offsets = [0, 3], sizes = [8, 1], strides = [1, 1]} : vector<8x4xi32> to vector<8x1xi32>
    %44 = vector.broadcast %43 : vector<8x1xi32> to vector<8x8xi32>
    %45 = arith.cmpi eq, %3, %44 : vector<8x8xi32>
    %c3_i32 = arith.constant 3 : i32
    %46 = vector.broadcast %c3_i32 : i32 to vector<8x1xi32>
    %47 = arith.cmpi sgt, %1, %46 : vector<8x1xi32>
    %48 = vector.broadcast %47 : vector<8x1xi1> to vector<8x8xi1>
    %49 = arith.andi %45, %48 : vector<8x8xi1>
    %50 = arith.extui %49 : vector<8x8xi1> to vector<8x8xi32>
    %51 = arith.sitofp %50 : vector<8x8xi32> to vector<8x8xf32>
    %52 = vector.shape_cast %51 : vector<8x8xf32> to vector<8x8x1xf32>
    %53 = vector.broadcast %52 : vector<8x8x1xf32> to vector<8x8x128xf32>
    %54 = arith.mulf %2, %53 : vector<8x8x128xf32>
    %cst_8 = arith.constant dense<0.000000e+00> : vector<8x128xf32>
    %55 = vector.multi_reduction <add>, %54, %cst_8 [1] : vector<8x8x128xf32> to vector<8x128xf32>
    %56 = tpu.concatenate %16, %29, %42, %55 in 1 : vector<8x128xf32>, vector<8x128xf32>, vector<8x128xf32>, vector<8x128xf32> -> vector<8x512xf32>
    %57 = arith.truncf %56 : vector<8x512xf32> to vector<8x512xbf16>
    %c0_9 = arith.constant 0 : index
    %c0_10 = arith.constant 0 : index
    %58 = vector.load %arg4[%c0_9, %c0_10] : memref<512x128xbf16, #tpu.memory_space<vmem>>, vector<512x128xbf16>
    %cst_11 = arith.constant dense<0.000000e+00> : vector<8x128xf32>
    %59 = tpu.matmul %57, %58, %cst_11 {dimension_numbers = #tpu.dot_dimension_numbers<[1], [0], [0], [1], [0, 0, 1, 1], [], []>} : vector<8x512xbf16>, vector<512x128xbf16>, vector<8x128xf32> -> vector<8x128xf32>
    %c0_12 = arith.constant 0 : index
    %c0_13 = arith.constant 0 : index
    %60 = vector.load %arg5[%c0_12, %c0_13] : memref<1x128xf32, #tpu.memory_space<vmem>>, vector<1x128xf32>
    %61 = vector.broadcast %60 : vector<1x128xf32> to vector<8x128xf32>
    %62 = arith.addf %59, %61 : vector<8x128xf32>
    %63 = tpu.iota {dimensions = array<i32: 1>} : vector<8x128xi32>
    %c8_i32 = arith.constant 8 : i32
    %64 = vector.broadcast %c8_i32 : i32 to vector<8x128xi32>
    %65 = arith.cmpi slt, %63, %64 : vector<8x128xi32>
    %cst_14 = arith.constant -1.000000e+30 : f32
    %66 = vector.broadcast %cst_14 : f32 to vector<8x128xf32>
    %67 = arith.select %65, %62, %66 : vector<8x128xi1>, vector<8x128xf32>
    %cst_15 = arith.constant dense<0xFF800000> : vector<8xf32>
    %68 = vector.multi_reduction <maximumf>, %67, %cst_15 [1] : vector<8x128xf32> to vector<8xf32>
    %69 = vector.shape_cast %68 : vector<8xf32> to vector<8x1xf32>
    %70 = vector.broadcast %69 : vector<8x1xf32> to vector<8x128xf32>
    %71 = arith.subf %67, %70 : vector<8x128xf32>
    %72 = math.exp %71 : vector<8x128xf32>
    %cst_16 = arith.constant dense<0.000000e+00> : vector<8xf32>
    %73 = vector.multi_reduction <add>, %72, %cst_16 [1] : vector<8x128xf32> to vector<8xf32>
    %74 = vector.shape_cast %73 : vector<8xf32> to vector<8x1xf32>
    %75 = tpu.reciprocal %74 {approx = true} : vector<8x1xf32> -> vector<8x1xf32>
    %76 = vector.broadcast %75 : vector<8x1xf32> to vector<8x128xf32>
    %77 = arith.mulf %72, %76 : vector<8x128xf32>
    %c0_17 = arith.constant 0 : index
    %c0_18 = arith.constant 0 : index
    %78 = vector.load %arg6[%c0_17, %c0_18] : memref<8x128xf32, #tpu.memory_space<vmem>>, vector<8x128xf32>
    tpu.vector_store %arg6[%c0_17, %c0_18], %77 {strides = array<i32>} : memref<8x128xf32, #tpu.memory_space<vmem>>, vector<8x128xf32>,
    return
  }
  func.func @transform_0(%arg0: i32) -> (i32, i32) {
    %c0_i32 = arith.constant 0 : i32
    %c0_i32_0 = arith.constant 0 : i32
    return %arg0, %c0_i32 : i32, i32
  }
  func.func @transform_1(%arg0: i32) -> (i32, i32) {
    %c0_i32 = arith.constant 0 : i32
    %c0_i32_0 = arith.constant 0 : i32
    return %arg0, %c0_i32 : i32, i32
  }
  func.func @transform_2(%arg0: i32) -> (i32, i32, i32) {
    %c0_i32 = arith.constant 0 : i32
    %c0_i32_0 = arith.constant 0 : i32
    %c0_i32_1 = arith.constant 0 : i32
    return %arg0, %c0_i32, %c0_i32_0 : i32, i32, i32
  }
  func.func @transform_3(%arg0: i32) -> (i32, i32) {
    %c0_i32 = arith.constant 0 : i32
    %c0_i32_0 = arith.constant 0 : i32
    %c0_i32_1 = arith.constant 0 : i32
    return %c0_i32, %c0_i32_0 : i32, i32
  }
  func.func @transform_4(%arg0: i32) -> (i32, i32) {
    %c0_i32 = arith.constant 0 : i32
    %c0_i32_0 = arith.constant 0 : i32
    %c0_i32_1 = arith.constant 0 : i32
    return %c0_i32, %c0_i32_0 : i32, i32
  }
  func.func @transform_5(%arg0: i32) -> (i32, i32) {
    %c0_i32 = arith.constant 0 : i32
    %c0_i32_0 = arith.constant 0 : i32
    return %arg0, %c0_i32 : i32, i32
  }
}

</mosaic_0001>

<llo_original>
// kernel: tpu_custom_call.1
$region0: #{tpu_custom_call.1}
  #allocation0 [shape = 'u32[]', space=smem, size = 0x4, offset = 0x4, fixed_abs, tag = 'smem constant byte address 0x4 - core index']
  #allocation1 [shape = 'u32[144,128]{1,0:T(1,128)}', space=vmem, size = 0x12000, scoped, tag = 'internal scratch']
  %s0 = inlined_call_operand.vmem [shape: s32[16,4], index: 0, kind: input, shape index: {}]
  %s1 = inlined_call_operand.vmem [shape: s32[16,1], index: 1, kind: input, shape index: {}]
  %s2 = inlined_call_operand.hbm [shape: f32[16,8,128], index: 2, kind: input, shape index: {}]
  %s3 = inlined_call_operand.hbm [shape: bf16[512,128], index: 3, kind: input, shape index: {}]
  %s4 = inlined_call_operand.vmem [shape: f32[1,128], index: 4, kind: input, shape index: {}]
  %s5 = inlined_call_operand.hbm [shape: f32[16,128], index: 5, kind: output, shape index: {}]
  %s6 = sld [smem:[#allocation0]]
  $region61: #{tpu_custom_call.1} parent=0
    _
  %s8 = ssub.s32 1, %s6
  %s9 = scalar_select 0, %s8, %s6
  $region1: #{tpu_custom_call.1} parent=0
    #allocation2 [shape = 'u8[65536]{0}', space=vmem, size = 0x10000, scoped, tag = 'input window, operand 2']
    #allocation3 [shape = 's32[2]{0}', space=sflag, size = 0x8, scoped, tag = 'scoped memory for tpu_custom_call.1']
    #allocation4 [shape = 's32[2]{0}', space=sflag, size = 0x8, scoped, tag = 'scoped memory for tpu_custom_call.1']
    #allocation5 [shape = 'u8[131072]{0}', space=vmem, size = 0x20000, scoped, tag = 'input window, operand 3, single buffered']
    #allocation6 [shape = 's32[1]{0}', space=sflag, size = 0x4, scoped, tag = 'scoped memory for tpu_custom_call.1']
    #allocation7 [shape = 'u8[8192]{0}', space=vmem, size = 0x2000, scoped, tag = 'output window, operand 0']
    %10 = vsyncpa [#allocation3], 0
    %s11 = scalar_lea.sflag [#allocation3], 1
    %12 = vsyncpa %s11, 0
    %13 = vsyncpa [#allocation6], 0
    %14 = vsyncpa [#allocation4], 0
    %s15 = scalar_lea.sflag [#allocation4], 1
    %16 = vsyncpa %s15, 0
    loop: start=0, step=1, limit=4
    $region2: #{tpu_custom_call.1} parent=1 // loop_pre_header
      _
    $region3: #{tpu_custom_call.1} parent=1 // loop_header
      %s18 = sphi 0, %s22
      %p19 = scmp.ge.s32.totalorder %s18, 4
      %s28 = sphi 0, %s30
      %s31 = sphi 0, %s28
      %s32 = sphi 0, %s31
      %s48 = sphi 0, %s32
      %s54 = sphi 0, %s56
      %s57 = sphi 0, %s54
      %s58 = sphi 0, %s57
      %s74 = sphi 0, %s58
      %s80 = sphi 0, %s82
      %s83 = sphi 0, %s80
      %s84 = sphi 0, %s83
      %s100 = sphi 0, %s84
      %s104 = sphi 0, %s104
      %s106 = sphi 0, %s104
      %s107 = sphi 0, %s106
      %s121 = sphi 0, %s107
      %s125 = sphi 0, %s125
      %s127 = sphi 0, %s125
      %s128 = sphi 0, %s127
      %s142 = sphi 0, %s128
      %s148 = sphi 0, %s150
      %s151 = sphi 0, %s148
      %s152 = sphi 0, %s151
      %s168 = sphi 0, %s152
    $region4: #{tpu_custom_call.1} parent=1 // loop_header_branch
      %21 = sbr.rel (%p19) target = $region8
    $region5: #{tpu_custom_call.1} parent=1 // loop_body
      %s23 = ssub.s32 %s18, 1
      %s24 = ssub.s32 %s18, 2
      %s25 = sadd.s32 %s18, 1
      %s26 = ssub.s32 %s18, %s25
      %p27 = scmp.eq.s32.totalorder %s26, 0
      %s29 = sadd.s32 %s28, 1
      %s30 = scalar_select %p27, %s28, %s29
      %p33 = pneg %p27
      %p34 = scmp.eq.s32.totalorder %s18, 1
      %p35 = por %p33, %p34
      %p36 = scmp.ne.s32.totalorder %s28, %s31
      %p37 = scmp.eq.s32.totalorder %s18, 0
      %p38 = por %p36, %p37
      %p39 = scmp.ne.s32.totalorder %s28, %s31
      %p40 = scmp.eq.s32.totalorder %s23, 1
      %p41 = por %p39, %p40
      %p42 = scmp.ne.s32.totalorder %s31, %s32
      %p43 = scmp.eq.s32.totalorder %s23, 0
      %p44 = por %p42, %p43
      %p45 = scmp.ne.s32.totalorder %s31, %s32
      %p46 = scmp.eq.s32.totalorder %s24, 1
      %p47 = por %p45, %p46
      %p49 = scmp.ne.s32.totalorder %s32, %s48
      %p50 = scmp.eq.s32.totalorder %s24, 0
      %p51 = por %p49, %p50
      %s52 = ssub.s32 %s18, %s25
      %p53 = scmp.eq.s32.totalorder %s52, 0
      %s55 = sadd.s32 %s54, 1
      %s56 = scalar_select %p53, %s54, %s55
      %p59 = pneg %p53
      %p60 = scmp.eq.s32.totalorder %s18, 1
      %p61 = por %p59, %p60
      %p62 = scmp.ne.s32.totalorder %s54, %s57
      %p63 = scmp.eq.s32.totalorder %s18, 0
      %p64 = por %p62, %p63
      %p65 = scmp.ne.s32.totalorder %s54, %s57
      %p66 = scmp.eq.s32.totalorder %s23, 1
      %p67 = por %p65, %p66
      %p68 = scmp.ne.s32.totalorder %s57, %s58
      %p69 = scmp.eq.s32.totalorder %s23, 0
      %p70 = por %p68, %p69
      %p71 = scmp.ne.s32.totalorder %s57, %s58
      %p72 = scmp.eq.s32.totalorder %s24, 1
      %p73 = por %p71, %p72
      %p75 = scmp.ne.s32.totalorder %s58, %s74
      %p76 = scmp.eq.s32.totalorder %s24, 0
      %p77 = por %p75, %p76
      %s78 = ssub.s32 %s18, %s25
      %p79 = scmp.eq.s32.totalorder %s78, 0
      %s81 = sadd.s32 %s80, 1
      %s82 = scalar_select %p79, %s80, %s81
      %p85 = pneg %p79
      %p86 = scmp.eq.s32.totalorder %s18, 1
      %p87 = por %p85, %p86
      %p88 = scmp.ne.s32.totalorder %s80, %s83
      %p89 = scmp.eq.s32.totalorder %s18, 0
      %p90 = por %p88, %p89
      %p91 = scmp.ne.s32.totalorder %s80, %s83
      %p92 = scmp.eq.s32.totalorder %s23, 1
      %p93 = por %p91, %p92
      %p94 = scmp.ne.s32.totalorder %s83, %s84
      %p95 = scmp.eq.s32.totalorder %s23, 0
      %p96 = por %p94, %p95
      %p97 = scmp.ne.s32.totalorder %s83, %s84
      %p98 = scmp.eq.s32.totalorder %s24, 1
      %p99 = por %p97, %p98
      %p101 = scmp.ne.s32.totalorder %s84, %s100
      %p102 = scmp.eq.s32.totalorder %s24, 0
      %p103 = por %p101, %p102
      %s105 = sadd.s32 %s104, 1
      %p108 = scmp.eq.s32.totalorder %s18, 1
      %p109 = scmp.ne.s32.totalorder %s104, %s106
      %p110 = scmp.eq.s32.totalorder %s18, 0
      %p111 = por %p109, %p110
      %p112 = scmp.ne.s32.totalorder %s104, %s106
      %p113 = scmp.eq.s32.totalorder %s23, 1
      %p114 = por %p112, %p113
      %p115 = scmp.ne.s32.totalorder %s106, %s107
      %p116 = scmp.eq.s32.totalorder %s23, 0
      %p117 = por %p115, %p116
      %p118 = scmp.ne.s32.totalorder %s106, %s107
      %p119 = scmp.eq.s32.totalorder %s24, 1
      %p120 = por %p118, %p119
      %p122 = scmp.ne.s32.totalorder %s107, %s121
      %p123 = scmp.eq.s32.totalorder %s24, 0
      %p124 = por %p122, %p123
      %s126 = sadd.s32 %s125, 1
      %p129 = scmp.eq.s32.totalorder %s18, 1
      %p130 = scmp.ne.s32.totalorder %s125, %s127
      %p131 = scmp.eq.s32.totalorder %s18, 0
      %p132 = por %p130, %p131
      %p133 = scmp.ne.s32.totalorder %s125, %s127
      %p134 = scmp.eq.s32.totalorder %s23, 1
      %p135 = por %p133, %p134
      %p136 = scmp.ne.s32.totalorder %s127, %s128
      %p137 = scmp.eq.s32.totalorder %s23, 0
      %p138 = por %p136, %p137
      %p139 = scmp.ne.s32.totalorder %s127, %s128
      %p140 = scmp.eq.s32.totalorder %s24, 1
      %p141 = por %p139, %p140
      %p143 = scmp.ne.s32.totalorder %s128, %s142
      %p144 = scmp.eq.s32.totalorder %s24, 0
      %p145 = por %p143, %p144
      %s146 = ssub.s32 %s18, %s25
      %p147 = scmp.eq.s32.totalorder %s146, 0
      %s149 = sadd.s32 %s148, 1
      %s150 = scalar_select %p147, %s148, %s149
      %p153 = pneg %p147
      %p154 = scmp.eq.s32.totalorder %s18, 1
      %p155 = por %p153, %p154
      %p156 = scmp.ne.s32.totalorder %s148, %s151
      %p157 = scmp.eq.s32.totalorder %s18, 0
      %p158 = por %p156, %p157
      %p159 = scmp.ne.s32.totalorder %s148, %s151
      %p160 = scmp.eq.s32.totalorder %s23, 1
      %p161 = por %p159, %p160
      %p162 = scmp.ne.s32.totalorder %s151, %s152
      %p163 = scmp.eq.s32.totalorder %s23, 0
      %p164 = por %p162, %p163
      %p165 = scmp.ne.s32.totalorder %s151, %s152
      %p166 = scmp.eq.s32.totalorder %s24, 1
      %p167 = por %p165, %p166
      %p169 = scmp.ne.s32.totalorder %s152, %s168
      %p170 = scmp.eq.s32.totalorder %s24, 0
      %p171 = por %p169, %p170
      %p172 = scmp.le.s32.totalorder 1, %s18
      %p173 = scmp.lt.s32.totalorder %s18, 3
      %p174 = pnand %p172, %p173
      %p175 = pneg %p174
      // Predicated region
      $region9: #{tpu_custom_call.1} parent=5 // pred_check
        _
      $region10: #{tpu_custom_call.1} parent=5 // pred_check_branch
        %177 = sbr.rel (%p174) target = $region12
      $region11: #{tpu_custom_call.1} parent=5 // pred_region
        %s178 = ssub.s32 %s18, 1
        // Predicated region
        $region13: #{tpu_custom_call.1} parent=11 // pred_check
          %p179 = pneg %p117
        $region14: #{tpu_custom_call.1} parent=11 // pred_check_branch
          %181 = sbr.rel (%p179) target = $region16
        $region15: #{tpu_custom_call.1} parent=11 // pred_region
          %s183 = ssub.s32 4096, 4096
          %184 = vsyncadd [#allocation6], %s183
          %s185 = sshll.u32 [#allocation5], 4
          %s186 = int_to_ptr.vmem [resolvable:$true] %s185
          %191 = dma.hbm_to_vmem [thread:$0]  %s3, 4096, %s186, [#allocation6], 64, 64, 4
        $region16: #{tpu_custom_call.1} parent=11 // pred_fallthru
          _
        // Predicated region
        $region17: #{tpu_custom_call.1} parent=11 // pred_check
          %p192 = pneg %p138
        $region18: #{tpu_custom_call.1} parent=11 // pred_check_branch
          %194 = sbr.rel (%p192) target = $region20
        $region19: #{tpu_custom_call.1} parent=11 // pred_region
          _
        $region20: #{tpu_custom_call.1} parent=11 // pred_fallthru
          _
      $region12: #{tpu_custom_call.1} parent=5 // pred_fallthru
        _
      %p195 = scmp.lt.s32.totalorder %s18, 2
      // Predicated region
      $region21: #{tpu_custom_call.1} parent=5 // pred_check
        %p196 = pneg %p195
      $region22: #{tpu_custom_call.1} parent=5 // pred_check_branch
        %198 = sbr.rel (%p196) target = $region24
      $region23: #{tpu_custom_call.1} parent=5 // pred_region
        // Predicated region
        $region25: #{tpu_custom_call.1} parent=23 // pred_check
          %p199 = pneg %p38
        $region26: #{tpu_custom_call.1} parent=23 // pred_check_branch
          %201 = sbr.rel (%p199) target = $region28
        $region27: #{tpu_custom_call.1} parent=23 // pred_region
          %p202 = scmp.lt.s32.totalorder %s18, 1
          %s203 = scalar_select %p202, %s18, 1
          %s204 = smul.addr %s203, 8
          %s205 = scalar_lea.vmem %s0, %s204
        $region28: #{tpu_custom_call.1} parent=23 // pred_fallthru
          _
        // Predicated region
        $region29: #{tpu_custom_call.1} parent=23 // pred_check
          %p206 = pneg %p64
        $region30: #{tpu_custom_call.1} parent=23 // pred_check_branch
          %208 = sbr.rel (%p206) target = $region32
        $region31: #{tpu_custom_call.1} parent=23 // pred_region
          %p209 = scmp.lt.s32.totalorder %s18, 1
          %s210 = scalar_select %p209, %s18, 1
          %s211 = smul.addr %s210, 8
          %s212 = scalar_lea.vmem %s1, %s211
        $region32: #{tpu_custom_call.1} parent=23 // pred_fallthru
          _
        // Predicated region
        $region33: #{tpu_custom_call.1} parent=23 // pred_check
          %p213 = pneg %p90
        $region34: #{tpu_custom_call.1} parent=23 // pred_check_branch
          %215 = sbr.rel (%p213) target = $region36
        $region35: #{tpu_custom_call.1} parent=23 // pred_region
          %s216 = sand.u32 %s80, 1
          %s217 = scalar_lea.sflag [#allocation3], %s216
          %s218 = sand.u32 %s80, 1
          %s219 = smul.addr %s218, 64
          %s220 = scalar_lea.vmem [#allocation2], %s219
          %s221 = smul.u32 8, %s18
          %s223 = ssub.s32 1024, 1024
          %224 = vsyncadd %s217, %s223
          %s225 = smul.addr %s221, 128
          %s226 = scalar_lea.hbm %s2, %s225
          %s227 = sshll.u32 %s220, 4
          %s228 = int_to_ptr.vmem [resolvable:$true] %s227
          %233 = dma.hbm_to_vmem [thread:$0]  %s226, 1024, %s228, %s217, 128, 128, 8
        $region36: #{tpu_custom_call.1} parent=23 // pred_fallthru
          _
      $region24: #{tpu_custom_call.1} parent=5 // pred_fallthru
        _
      %p234 = scmp.le.s32.totalorder 1, %s18
      %p235 = scmp.lt.s32.totalorder %s18, 3
      %p236 = pnand %p234, %p235
      %p237 = pneg %p236
      // Predicated region
      $region37: #{tpu_custom_call.1} parent=5 // pred_check
        _
      $region38: #{tpu_custom_call.1} parent=5 // pred_check_branch
        %239 = sbr.rel (%p236) target = $region40
      $region39: #{tpu_custom_call.1} parent=5 // pred_region
        %s240 = ssub.s32 %s18, 1
        %s241 = sand.u32 %s83, 1
        %s242 = scalar_lea.sflag [#allocation3], %s241
        %s243 = sand.u32 %s83, 1
        %s244 = smul.addr %s243, 64
        %s245 = scalar_lea.vmem [#allocation2], %s244
        // Predicated region
        $region41: #{tpu_custom_call.1} parent=39 // pred_check
          %p246 = pneg %p96
        $region42: #{tpu_custom_call.1} parent=39 // pred_check_branch
          %248 = sbr.rel (%p246) target = $region44
        $region43: #{tpu_custom_call.1} parent=39 // pred_region
          %249 = dma.done %s242, 1024
        $region44: #{tpu_custom_call.1} parent=39 // pred_fallthru
          _
        // Predicated region
        $region45: #{tpu_custom_call.1} parent=39 // pred_check
          %p250 = pneg %p117
        $region46: #{tpu_custom_call.1} parent=39 // pred_check_branch
          %252 = sbr.rel (%p250) target = $region48
        $region47: #{tpu_custom_call.1} parent=39 // pred_region
          %253 = dma.done [#allocation6], 4096
        $region48: #{tpu_custom_call.1} parent=39 // pred_fallthru
          _
        %p254 = scmp.lt.s32.totalorder %s23, 1
        %s255 = scalar_select %p254, %s23, 1
        %s256 = smul.addr %s255, 8
        %s257 = scalar_lea.vmem %s0, %s256
        %p258 = pneg %p44
        %p259 = pneg %p41
        %p260 = scmp.lt.s32.totalorder %s23, 1
        %s261 = scalar_select %p260, %s23, 1
        %s262 = smul.addr %s261, 8
        %s263 = scalar_lea.vmem %s1, %s262
        %p264 = pneg %p70
        %p265 = pneg %p67
        %s266 = sand.u32 %s83, 1
        %s267 = scalar_lea.sflag [#allocation3], %s266
        %s268 = sand.u32 %s83, 1
        %s269 = smul.addr %s268, 64
        %s270 = scalar_lea.vmem [#allocation2], %s269
        %p271 = pneg %p96
        %p272 = pneg %p93
        %p273 = pneg %p117
        %p274 = pneg %p114
        %p275 = pneg %p138
        %p276 = pneg %p135
        %p277 = pneg %p164
        %p278 = pneg %p161
        %s279 = sand.u32 %s151, 1
        %s280 = scalar_lea.sflag [#allocation4], %s279
        %s281 = sand.u32 %s151, 1
        %s282 = smul.addr %s281, 8
        %s283 = scalar_lea.vmem [#allocation7], %s282
        %p284 = scmp.lt.s32.totalorder %s23, 1
        %s285 = scalar_select %p284, %s23, 1
        %s286 = smul.addr %s285, 8
        %s287 = scalar_lea.vmem %s0, %s286
        %p288 = scmp.lt.s32.totalorder %s23, 1
        %s289 = scalar_select %p288, %s23, 1
        %s290 = smul.addr %s289, 8
        %s291 = scalar_lea.vmem %s1, %s290
        %s292 = smul.u32 8, %s23
        %v294 = vld [vmem:[%s287] sm:$0xff]
        %v295 = vld [vmem:[%s291] sm:$0xff]
        %v296 = vld [vmem:[%s245] sm:$0xff]
        %v297 = vld [vmem:[%s245 + $0x8] sm:$0xff]
        %v298 = vld [vmem:[%s245 + $0x10] sm:$0xff]
        %v299 = vld [vmem:[%s245 + $0x18] sm:$0xff]
        %v300 = vld [vmem:[%s245 + $0x20] sm:$0xff]
        %v301 = vld [vmem:[%s245 + $0x28] sm:$0xff]
        %v302 = vld [vmem:[%s245 + $0x30] sm:$0xff]
        %v303 = vld [vmem:[%s245 + $0x38] sm:$0xff]
        %v304 = vlaneseq
        %v305 = vand.u32 %v304, 127
        %306 = vset.pattern.permute.xlu0 0
        %307 = vperm.xlu0 %306, %v294
        %v308 = vpop.permute.xlu0 %307
        %vm309 = vcmp.eq.s32.totalorder %v305, %v308
        %vm310 = vcmp.gt.s32.totalorder %v295, 0
        %v311 = vsel %vm310, 1, 0
        %312 = vset.pattern.permute.xlu0 0
        %313 = vperm.xlu0 %312, %v311
        %v314 = vpop.permute.xlu0 %313
        %vm315 = vcmp.eq.s32.totalorder %v314, 1
        %vm316 = vmand %vm309, %vm315
        %v317 = vsel %vm316, 1, 0
        %v318 = vcvt.s32.f32 %v317
        %v319 = vlaneseq
        %v320 = vshrl.u32 %v319, 7
        %v321 = vsub.s32 0, %v320
        %v322 = vrot.slane %v318, %v321
        %324 = vbcast.lane.b32.xlu0 %v322, 256
        %v325 = vpop.permute.xlu0 %324
        %v326 = vlaneseq
        %v327 = vshrl.u32 %v326, 7
        %v328 = vsub.s32 1, %v327
        %v329 = vrot.slane %v318, %v328
        %331 = vbcast.lane.b32.xlu0 %v329, 256
        %v332 = vpop.permute.xlu0 %331
        %v333 = vlaneseq
        %v334 = vshrl.u32 %v333, 7
        %v335 = vsub.s32 2, %v334
        %v336 = vrot.slane %v318, %v335
        %338 = vbcast.lane.b32.xlu0 %v336, 256
        %v339 = vpop.permute.xlu0 %338
        %v340 = vlaneseq
        %v341 = vshrl.u32 %v340, 7
        %v342 = vsub.s32 3, %v341
        %v343 = vrot.slane %v318, %v342
        %345 = vbcast.lane.b32.xlu0 %v343, 256
        %v346 = vpop.permute.xlu0 %345
        %v347 = vlaneseq
        %v348 = vshrl.u32 %v347, 7
        %v349 = vsub.s32 4, %v348
        %v350 = vrot.slane %v318, %v349
        %352 = vbcast.lane.b32.xlu0 %v350, 256
        %v353 = vpop.permute.xlu0 %352
        %v354 = vlaneseq
        %v355 = vshrl.u32 %v354, 7
        %v356 = vsub.s32 5, %v355
        %v357 = vrot.slane %v318, %v356
        %359 = vbcast.lane.b32.xlu0 %v357, 256
        %v360 = vpop.permute.xlu0 %359
        %v361 = vlaneseq
        %v362 = vshrl.u32 %v361, 7
        %v363 = vsub.s32 6, %v362
        %v364 = vrot.slane %v318, %v363
        %366 = vbcast.lane.b32.xlu0 %v364, 256
        %v367 = vpop.permute.xlu0 %366
        %v368 = vlaneseq
        %v369 = vshrl.u32 %v368, 7
        %v370 = vsub.s32 7, %v369
        %v371 = vrot.slane %v318, %v370
        %373 = vbcast.lane.b32.xlu0 %v371, 256
        %v374 = vpop.permute.xlu0 %373
        %v375 = vmul.f32 %v296, %v325
        %v376 = vmul.f32 %v297, %v332
        %v377 = vmul.f32 %v298, %v339
        %v378 = vmul.f32 %v299, %v346
        %v379 = vmul.f32 %v300, %v353
        %v380 = vmul.f32 %v301, %v360
        %v381 = vmul.f32 %v302, %v367
        %v382 = vmul.f32 %v303, %v374
        %v383 = vrot.slane %v375, 4
        %v384 = vadd.f32 %v375, %v383
        %v385 = vrot.slane %v384, 2
        %v386 = vadd.f32 %v384, %v385
        %v387 = vrot.slane %v386, 1
        %v388 = vadd.f32 %v386, %v387
        %v389 = vrot.slane %v376, 4
        %v390 = vadd.f32 %v376, %v389
        %v391 = vrot.slane %v390, 2
        %v392 = vadd.f32 %v390, %v391
        %v393 = vrot.slane %v392, 1
        %v394 = vadd.f32 %v392, %v393
        %v395 = vrot.slane %v377, 4
        %v396 = vadd.f32 %v377, %v395
        %v397 = vrot.slane %v396, 2
        %v398 = vadd.f32 %v396, %v397
        %v399 = vrot.slane %v398, 1
        %v400 = vadd.f32 %v398, %v399
        %v401 = vrot.slane %v378, 4
        %v402 = vadd.f32 %v378, %v401
        %v403 = vrot.slane %v402, 2
        %v404 = vadd.f32 %v402, %v403
        %v405 = vrot.slane %v404, 1
        %v406 = vadd.f32 %v404, %v405
        %v407 = vrot.slane %v379, 4
        %v408 = vadd.f32 %v379, %v407
        %v409 = vrot.slane %v408, 2
        %v410 = vadd.f32 %v408, %v409
        %v411 = vrot.slane %v410, 1
        %v412 = vadd.f32 %v410, %v411
        %v413 = vrot.slane %v380, 4
        %v414 = vadd.f32 %v380, %v413
        %v415 = vrot.slane %v414, 2
        %v416 = vadd.f32 %v414, %v415
        %v417 = vrot.slane %v416, 1
        %v418 = vadd.f32 %v416, %v417
        %v419 = vrot.slane %v381, 4
        %v420 = vadd.f32 %v381, %v419
        %v421 = vrot.slane %v420, 2
        %v422 = vadd.f32 %v420, %v421
        %v423 = vrot.slane %v422, 1
        %v424 = vadd.f32 %v422, %v423
        %v425 = vrot.slane %v382, 4
        %v426 = vadd.f32 %v382, %v425
        %v427 = vrot.slane %v426, 2
        %v428 = vadd.f32 %v426, %v427
        %v429 = vrot.slane %v428, 1
        %v430 = vadd.f32 %v428, %v429
        %431 = vset.pattern.permute.xlu0 1
        %432 = vperm.xlu0 %431, %v294
        %v433 = vpop.permute.xlu0 %432
        %vm434 = vcmp.eq.s32.totalorder %v305, %v433
        %vm435 = vcmp.gt.s32.totalorder %v295, 1
        %v436 = vsel %vm435, 1, 0
        %437 = vset.pattern.permute.xlu0 0
        %438 = vperm.xlu0 %437, %v436
        %v439 = vpop.permute.xlu0 %438
        %vm440 = vcmp.eq.s32.totalorder %v439, 1
        %vm441 = vmand %vm434, %vm440
        %v442 = vsel %vm441, 1, 0
        %v443 = vcvt.s32.f32 %v442
        %v444 = vlaneseq
        %v445 = vshrl.u32 %v444, 7
        %v446 = vsub.s32 0, %v445
        %v447 = vrot.slane %v443, %v446
        %449 = vbcast.lane.b32.xlu0 %v447, 256
        %v450 = vpop.permute.xlu0 %449
        %v451 = vlaneseq
        %v452 = vshrl.u32 %v451, 7
        %v453 = vsub.s32 1, %v452
        %v454 = vrot.slane %v443, %v453
        %456 = vbcast.lane.b32.xlu0 %v454, 256
        %v457 = vpop.permute.xlu0 %456
        %v458 = vlaneseq
        %v459 = vshrl.u32 %v458, 7
        %v460 = vsub.s32 2, %v459
        %v461 = vrot.slane %v443, %v460
        %463 = vbcast.lane.b32.xlu0 %v461, 256
        %v464 = vpop.permute.xlu0 %463
        %v465 = vlaneseq
        %v466 = vshrl.u32 %v465, 7
        %v467 = vsub.s32 3, %v466
        %v468 = vrot.slane %v443, %v467
        %470 = vbcast.lane.b32.xlu0 %v468, 256
        %v471 = vpop.permute.xlu0 %470
        %v472 = vlaneseq
        %v473 = vshrl.u32 %v472, 7
        %v474 = vsub.s32 4, %v473
        %v475 = vrot.slane %v443, %v474
        %477 = vbcast.lane.b32.xlu0 %v475, 256
        %v478 = vpop.permute.xlu0 %477
        %v479 = vlaneseq
        %v480 = vshrl.u32 %v479, 7
        %v481 = vsub.s32 5, %v480
        %v482 = vrot.slane %v443, %v481
        %484 = vbcast.lane.b32.xlu0 %v482, 256
        %v485 = vpop.permute.xlu0 %484
        %v486 = vlaneseq
        %v487 = vshrl.u32 %v486, 7
        %v488 = vsub.s32 6, %v487
        %v489 = vrot.slane %v443, %v488
        %491 = vbcast.lane.b32.xlu0 %v489, 256
        %v492 = vpop.permute.xlu0 %491
        %v493 = vlaneseq
        %v494 = vshrl.u32 %v493, 7
        %v495 = vsub.s32 7, %v494
        %v496 = vrot.slane %v443, %v495
        %498 = vbcast.lane.b32.xlu0 %v496, 256
        %v499 = vpop.permute.xlu0 %498
        %v500 = vmul.f32 %v296, %v450
        %v501 = vmul.f32 %v297, %v457
        %v502 = vmul.f32 %v298, %v464
        %v503 = vmul.f32 %v299, %v471
        %v504 = vmul.f32 %v300, %v478
        %v505 = vmul.f32 %v301, %v485
        %v506 = vmul.f32 %v302, %v492
        %v507 = vmul.f32 %v303, %v499
        %v508 = vrot.slane %v500, 4
        %v509 = vadd.f32 %v500, %v508
        %v510 = vrot.slane %v509, 2
        %v511 = vadd.f32 %v509, %v510
        %v512 = vrot.slane %v511, 1
        %v513 = vadd.f32 %v511, %v512
        %v514 = vrot.slane %v501, 4
        %v515 = vadd.f32 %v501, %v514
        %v516 = vrot.slane %v515, 2
        %v517 = vadd.f32 %v515, %v516
        %v518 = vrot.slane %v517, 1
        %v519 = vadd.f32 %v517, %v518
        %v520 = vrot.slane %v502, 4
        %v521 = vadd.f32 %v502, %v520
        %v522 = vrot.slane %v521, 2
        %v523 = vadd.f32 %v521, %v522
        %v524 = vrot.slane %v523, 1
        %v525 = vadd.f32 %v523, %v524
        %v526 = vrot.slane %v503, 4
        %v527 = vadd.f32 %v503, %v526
        %v528 = vrot.slane %v527, 2
        %v529 = vadd.f32 %v527, %v528
        %v530 = vrot.slane %v529, 1
        %v531 = vadd.f32 %v529, %v530
        %v532 = vrot.slane %v504, 4
        %v533 = vadd.f32 %v504, %v532
        %v534 = vrot.slane %v533, 2
        %v535 = vadd.f32 %v533, %v534
        %v536 = vrot.slane %v535, 1
        %v537 = vadd.f32 %v535, %v536
        %v538 = vrot.slane %v505, 4
        %v539 = vadd.f32 %v505, %v538
        %v540 = vrot.slane %v539, 2
        %v541 = vadd.f32 %v539, %v540
        %v542 = vrot.slane %v541, 1
        %v543 = vadd.f32 %v541, %v542
        %v544 = vrot.slane %v506, 4
        %v545 = vadd.f32 %v506, %v544
        %v546 = vrot.slane %v545, 2
        %v547 = vadd.f32 %v545, %v546
        %v548 = vrot.slane %v547, 1
        %v549 = vadd.f32 %v547, %v548
        %v550 = vrot.slane %v507, 4
        %v551 = vadd.f32 %v507, %v550
        %v552 = vrot.slane %v551, 2
        %v553 = vadd.f32 %v551, %v552
        %v554 = vrot.slane %v553, 1
        %v555 = vadd.f32 %v553, %v554
        %556 = vset.pattern.permute.xlu0 2
        %557 = vperm.xlu0 %556, %v294
        %v558 = vpop.permute.xlu0 %557
        %vm559 = vcmp.eq.s32.totalorder %v305, %v558
        %vm560 = vcmp.gt.s32.totalorder %v295, 2
        %v561 = vsel %vm560, 1, 0
        %562 = vset.pattern.permute.xlu0 0
        %563 = vperm.xlu0 %562, %v561
        %v564 = vpop.permute.xlu0 %563
        %vm565 = vcmp.eq.s32.totalorder %v564, 1
        %vm566 = vmand %vm559, %vm565
        %v567 = vsel %vm566, 1, 0
        %v568 = vcvt.s32.f32 %v567
        %v569 = vlaneseq
        %v570 = vshrl.u32 %v569, 7
        %v571 = vsub.s32 0, %v570
        %v572 = vrot.slane %v568, %v571
        %574 = vbcast.lane.b32.xlu0 %v572, 256
        %v575 = vpop.permute.xlu0 %574
        %v576 = vlaneseq
        %v577 = vshrl.u32 %v576, 7
        %v578 = vsub.s32 1, %v577
        %v579 = vrot.slane %v568, %v578
        %581 = vbcast.lane.b32.xlu0 %v579, 256
        %v582 = vpop.permute.xlu0 %581
        %v583 = vlaneseq
        %v584 = vshrl.u32 %v583, 7
        %v585 = vsub.s32 2, %v584
        %v586 = vrot.slane %v568, %v585
        %588 = vbcast.lane.b32.xlu0 %v586, 256
        %v589 = vpop.permute.xlu0 %588
        %v590 = vlaneseq
        %v591 = vshrl.u32 %v590, 7
        %v592 = vsub.s32 3, %v591
        %v593 = vrot.slane %v568, %v592
        %595 = vbcast.lane.b32.xlu0 %v593, 256
        %v596 = vpop.permute.xlu0 %595
        %v597 = vlaneseq
        %v598 = vshrl.u32 %v597, 7
        %v599 = vsub.s32 4, %v598
        %v600 = vrot.slane %v568, %v599
        %602 = vbcast.lane.b32.xlu0 %v600, 256
        %v603 = vpop.permute.xlu0 %602
        %v604 = vlaneseq
        %v605 = vshrl.u32 %v604, 7
        %v606 = vsub.s32 5, %v605
        %v607 = vrot.slane %v568, %v606
        %609 = vbcast.lane.b32.xlu0 %v607, 256
        %v610 = vpop.permute.xlu0 %609
        %v611 = vlaneseq
        %v612 = vshrl.u32 %v611, 7
        %v613 = vsub.s32 6, %v612
        %v614 = vrot.slane %v568, %v613
        %616 = vbcast.lane.b32.xlu0 %v614, 256
        %v617 = vpop.permute.xlu0 %616
        %v618 = vlaneseq
        %v619 = vshrl.u32 %v618, 7
        %v620 = vsub.s32 7, %v619
        %v621 = vrot.slane %v568, %v620
        %623 = vbcast.lane.b32.xlu0 %v621, 256
        %v624 = vpop.permute.xlu0 %623
        %v625 = vmul.f32 %v296, %v575
        %v626 = vmul.f32 %v297, %v582
        %v627 = vmul.f32 %v298, %v589
        %v628 = vmul.f32 %v299, %v596
        %v629 = vmul.f32 %v300, %v603
        %v630 = vmul.f32 %v301, %v610
        %v631 = vmul.f32 %v302, %v617
        %v632 = vmul.f32 %v303, %v624
        %v633 = vrot.slane %v625, 4
        %v634 = vadd.f32 %v625, %v633
        %v635 = vrot.slane %v634, 2
        %v636 = vadd.f32 %v634, %v635
        %v637 = vrot.slane %v636, 1
        %v638 = vadd.f32 %v636, %v637
        %v639 = vrot.slane %v626, 4
        %v640 = vadd.f32 %v626, %v639
        %v641 = vrot.slane %v640, 2
        %v642 = vadd.f32 %v640, %v641
        %v643 = vrot.slane %v642, 1
        %v644 = vadd.f32 %v642, %v643
        %v645 = vrot.slane %v627, 4
        %v646 = vadd.f32 %v627, %v645
        %v647 = vrot.slane %v646, 2
        %v648 = vadd.f32 %v646, %v647
        %v649 = vrot.slane %v648, 1
        %v650 = vadd.f32 %v648, %v649
        %v651 = vrot.slane %v628, 4
        %v652 = vadd.f32 %v628, %v651
        %v653 = vrot.slane %v652, 2
        %v654 = vadd.f32 %v652, %v653
        %v655 = vrot.slane %v654, 1
        %v656 = vadd.f32 %v654, %v655
        %v657 = vrot.slane %v629, 4
        %v658 = vadd.f32 %v629, %v657
        %v659 = vrot.slane %v658, 2
        %v660 = vadd.f32 %v658, %v659
        %v661 = vrot.slane %v660, 1
        %v662 = vadd.f32 %v660, %v661
        %v663 = vrot.slane %v630, 4
        %v664 = vadd.f32 %v630, %v663
        %v665 = vrot.slane %v664, 2
        %v666 = vadd.f32 %v664, %v665
        %v667 = vrot.slane %v666, 1
        %v668 = vadd.f32 %v666, %v667
        %v669 = vrot.slane %v631, 4
        %v670 = vadd.f32 %v631, %v669
        %v671 = vrot.slane %v670, 2
        %v672 = vadd.f32 %v670, %v671
        %v673 = vrot.slane %v672, 1
        %v674 = vadd.f32 %v672, %v673
        %v675 = vrot.slane %v632, 4
        %v676 = vadd.f32 %v632, %v675
        %v677 = vrot.slane %v676, 2
        %v678 = vadd.f32 %v676, %v677
        %v679 = vrot.slane %v678, 1
        %v680 = vadd.f32 %v678, %v679
        %681 = vset.pattern.permute.xlu0 3
        %682 = vperm.xlu0 %681, %v294
        %v683 = vpop.permute.xlu0 %682
        %vm684 = vcmp.eq.s32.totalorder %v305, %v683
        %vm685 = vcmp.gt.s32.totalorder %v295, 3
        %v686 = vsel %vm685, 1, 0
        %687 = vset.pattern.permute.xlu0 0
        %688 = vperm.xlu0 %687, %v686
        %v689 = vpop.permute.xlu0 %688
        %vm690 = vcmp.eq.s32.totalorder %v689, 1
        %vm691 = vmand %vm684, %vm690
        %v692 = vsel %vm691, 1, 0
        %v693 = vcvt.s32.f32 %v692
        %v694 = vlaneseq
        %v695 = vshrl.u32 %v694, 7
        %v696 = vsub.s32 0, %v695
        %v697 = vrot.slane %v693, %v696
        %699 = vbcast.lane.b32.xlu0 %v697, 256
        %v700 = vpop.permute.xlu0 %699
        %v701 = vlaneseq
        %v702 = vshrl.u32 %v701, 7
        %v703 = vsub.s32 1, %v702
        %v704 = vrot.slane %v693, %v703
        %706 = vbcast.lane.b32.xlu0 %v704, 256
        %v707 = vpop.permute.xlu0 %706
        %v708 = vlaneseq
        %v709 = vshrl.u32 %v708, 7
        %v710 = vsub.s32 2, %v709
        %v711 = vrot.slane %v693, %v710
        %713 = vbcast.lane.b32.xlu0 %v711, 256
        %v714 = vpop.permute.xlu0 %713
        %v715 = vlaneseq
        %v716 = vshrl.u32 %v715, 7
        %v717 = vsub.s32 3, %v716
        %v718 = vrot.slane %v693, %v717
        %720 = vbcast.lane.b32.xlu0 %v718, 256
        %v721 = vpop.permute.xlu0 %720
        %v722 = vlaneseq
        %v723 = vshrl.u32 %v722, 7
        %v724 = vsub.s32 4, %v723
        %v725 = vrot.slane %v693, %v724
        %727 = vbcast.lane.b32.xlu0 %v725, 256
        %v728 = vpop.permute.xlu0 %727
        %v729 = vlaneseq
        %v730 = vshrl.u32 %v729, 7
        %v731 = vsub.s32 5, %v730
        %v732 = vrot.slane %v693, %v731
        %734 = vbcast.lane.b32.xlu0 %v732, 256
        %v735 = vpop.permute.xlu0 %734
        %v736 = vlaneseq
        %v737 = vshrl.u32 %v736, 7
        %v738 = vsub.s32 6, %v737
        %v739 = vrot.slane %v693, %v738
        %741 = vbcast.lane.b32.xlu0 %v739, 256
        %v742 = vpop.permute.xlu0 %741
        %v743 = vlaneseq
        %v744 = vshrl.u32 %v743, 7
        %v745 = vsub.s32 7, %v744
        %v746 = vrot.slane %v693, %v745
        %748 = vbcast.lane.b32.xlu0 %v746, 256
        %v749 = vpop.permute.xlu0 %748
        %v750 = vmul.f32 %v296, %v700
        %v751 = vmul.f32 %v297, %v707
        %v752 = vmul.f32 %v298, %v714
        %v753 = vmul.f32 %v299, %v721
        %v754 = vmul.f32 %v300, %v728
        %v755 = vmul.f32 %v301, %v735
        %v756 = vmul.f32 %v302, %v742
        %v757 = vmul.f32 %v303, %v749
        %v758 = vrot.slane %v750, 4
        %v759 = vadd.f32 %v750, %v758
        %v760 = vrot.slane %v759, 2
        %v761 = vadd.f32 %v759, %v760
        %v762 = vrot.slane %v761, 1
        %v763 = vadd.f32 %v761, %v762
        %v764 = vrot.slane %v751, 4
        %v765 = vadd.f32 %v751, %v764
        %v766 = vrot.slane %v765, 2
        %v767 = vadd.f32 %v765, %v766
        %v768 = vrot.slane %v767, 1
        %v769 = vadd.f32 %v767, %v768
        %v770 = vrot.slane %v752, 4
        %v771 = vadd.f32 %v752, %v770
        %v772 = vrot.slane %v771, 2
        %v773 = vadd.f32 %v771, %v772
        %v774 = vrot.slane %v773, 1
        %v775 = vadd.f32 %v773, %v774
        %v776 = vrot.slane %v753, 4
        %v777 = vadd.f32 %v753, %v776
        %v778 = vrot.slane %v777, 2
        %v779 = vadd.f32 %v777, %v778
        %v780 = vrot.slane %v779, 1
        %v781 = vadd.f32 %v779, %v780
        %v782 = vrot.slane %v754, 4
        %v783 = vadd.f32 %v754, %v782
        %v784 = vrot.slane %v783, 2
        %v785 = vadd.f32 %v783, %v784
        %v786 = vrot.slane %v785, 1
        %v787 = vadd.f32 %v785, %v786
        %v788 = vrot.slane %v755, 4
        %v789 = vadd.f32 %v755, %v788
        %v790 = vrot.slane %v789, 2
        %v791 = vadd.f32 %v789, %v790
        %v792 = vrot.slane %v791, 1
        %v793 = vadd.f32 %v791, %v792
        %v794 = vrot.slane %v756, 4
        %v795 = vadd.f32 %v756, %v794
        %v796 = vrot.slane %v795, 2
        %v797 = vadd.f32 %v795, %v796
        %v798 = vrot.slane %v797, 1
        %v799 = vadd.f32 %v797, %v798
        %v800 = vrot.slane %v757, 4
        %v801 = vadd.f32 %v757, %v800
        %v802 = vrot.slane %v801, 2
        %v803 = vadd.f32 %v801, %v802
        %v804 = vrot.slane %v803, 1
        %v805 = vadd.f32 %v803, %v804
        %vm814 = vcmask 1041409
        %v815 = vsel %vm814, %v394, %v388
        %vm816 = vcmask 1042434
        %v817 = vsel %vm816, %v400, %v815
        %vm818 = vcmask 1043459
        %v819 = vsel %vm818, %v406, %v817
        %vm820 = vcmask 1044484
        %v821 = vsel %vm820, %v412, %v819
        %vm822 = vcmask 1045509
        %v823 = vsel %vm822, %v418, %v821
        %vm824 = vcmask 1046534
        %v825 = vsel %vm824, %v424, %v823
        %vm826 = vcmask 1047559
        %v827 = vsel %vm826, %v430, %v825
        %v837 = vsel %vm814, %v519, %v513
        %v838 = vsel %vm816, %v525, %v837
        %v839 = vsel %vm818, %v531, %v838
        %v840 = vsel %vm820, %v537, %v839
        %v841 = vsel %vm822, %v543, %v840
        %v842 = vsel %vm824, %v549, %v841
        %v843 = vsel %vm826, %v555, %v842
        %v853 = vsel %vm814, %v644, %v638
        %v854 = vsel %vm816, %v650, %v853
        %v855 = vsel %vm818, %v656, %v854
        %v856 = vsel %vm820, %v662, %v855
        %v857 = vsel %vm822, %v668, %v856
        %v858 = vsel %vm824, %v674, %v857
        %v859 = vsel %vm826, %v680, %v858
        %v869 = vsel %vm814, %v769, %v763
        %v870 = vsel %vm816, %v775, %v869
        %v871 = vsel %vm818, %v781, %v870
        %v872 = vsel %vm820, %v787, %v871
        %v873 = vsel %vm822, %v793, %v872
        %v874 = vsel %vm824, %v799, %v873
        %v875 = vsel %vm826, %v805, %v874
        %v877 = vpack.c.bf16 %v827, %v827
        %v878 = vpack.c.bf16 %v843, %v843
        %v879 = vpack.c.bf16 %v859, %v859
        %v880 = vpack.c.bf16 %v875, %v875
        %v881 = vld [vmem:[#allocation5] sm:$0xf]
        %v882 = vld [vmem:[#allocation5 + $0x4] sm:$0xf]
        %v883 = vld [vmem:[#allocation5 + $0x8] sm:$0xf]
        %v884 = vld [vmem:[#allocation5 + $0xc] sm:$0xf]
        %v885 = vld [vmem:[#allocation5 + $0x10] sm:$0xf]
        %v886 = vld [vmem:[#allocation5 + $0x14] sm:$0xf]
        %v887 = vld [vmem:[#allocation5 + $0x18] sm:$0xf]
        %v888 = vld [vmem:[#allocation5 + $0x1c] sm:$0xf]
        %v889 = vld [vmem:[#allocation5 + $0x20] sm:$0xf]
        %v890 = vld [vmem:[#allocation5 + $0x24] sm:$0xf]
        %v891 = vld [vmem:[#allocation5 + $0x28] sm:$0xf]
        %v892 = vld [vmem:[#allocation5 + $0x2c] sm:$0xf]
        %v893 = vld [vmem:[#allocation5 + $0x30] sm:$0xf]
        %v894 = vld [vmem:[#allocation5 + $0x34] sm:$0xf]
        %v895 = vld [vmem:[#allocation5 + $0x38] sm:$0xf]
        %v896 = vld [vmem:[#allocation5 + $0x3c] sm:$0xf]
        %v897 = vld [vmem:[#allocation5 + $0x40] sm:$0xf]
        %v898 = vld [vmem:[#allocation5 + $0x44] sm:$0xf]
        %v899 = vld [vmem:[#allocation5 + $0x48] sm:$0xf]
        %v900 = vld [vmem:[#allocation5 + $0x4c] sm:$0xf]
        %v901 = vld [vmem:[#allocation5 + $0x50] sm:$0xf]
        %v902 = vld [vmem:[#allocation5 + $0x54] sm:$0xf]
        %v903 = vld [vmem:[#allocation5 + $0x58] sm:$0xf]
        %v904 = vld [vmem:[#allocation5 + $0x5c] sm:$0xf]
        %v905 = vld [vmem:[#allocation5 + $0x60] sm:$0xf]
        %v906 = vld [vmem:[#allocation5 + $0x64] sm:$0xf]
        %v907 = vld [vmem:[#allocation5 + $0x68] sm:$0xf]
        %v908 = vld [vmem:[#allocation5 + $0x6c] sm:$0xf]
        %v909 = vld [vmem:[#allocation5 + $0x70] sm:$0xf]
        %v910 = vld [vmem:[#allocation5 + $0x74] sm:$0xf]
        %v911 = vld [vmem:[#allocation5 + $0x78] sm:$0xf]
        %v912 = vld [vmem:[#allocation5 + $0x7c] sm:$0xf]
        %v913 = vld [vmem:[#allocation5 + $0x80] sm:$0xf]
        %v914 = vld [vmem:[#allocation5 + $0x84] sm:$0xf]
        %v915 = vld [vmem:[#allocation5 + $0x88] sm:$0xf]
        %v916 = vld [vmem:[#allocation5 + $0x8c] sm:$0xf]
        %v917 = vld [vmem:[#allocation5 + $0x90] sm:$0xf]
        %v918 = vld [vmem:[#allocation5 + $0x94] sm:$0xf]
        %v919 = vld [vmem:[#allocation5 + $0x98] sm:$0xf]
        %v920 = vld [vmem:[#allocation5 + $0x9c] sm:$0xf]
        %v921 = vld [vmem:[#allocation5 + $0xa0] sm:$0xf]
        %v922 = vld [vmem:[#allocation5 + $0xa4] sm:$0xf]
        %v923 = vld [vmem:[#allocation5 + $0xa8] sm:$0xf]
        %v924 = vld [vmem:[#allocation5 + $0xac] sm:$0xf]
        %v925 = vld [vmem:[#allocation5 + $0xb0] sm:$0xf]
        %v926 = vld [vmem:[#allocation5 + $0xb4] sm:$0xf]
        %v927 = vld [vmem:[#allocation5 + $0xb8] sm:$0xf]
        %v928 = vld [vmem:[#allocation5 + $0xbc] sm:$0xf]
        %v929 = vld [vmem:[#allocation5 + $0xc0] sm:$0xf]
        %v930 = vld [vmem:[#allocation5 + $0xc4] sm:$0xf]
        %v931 = vld [vmem:[#allocation5 + $0xc8] sm:$0xf]
        %v932 = vld [vmem:[#allocation5 + $0xcc] sm:$0xf]
        %v933 = vld [vmem:[#allocation5 + $0xd0] sm:$0xf]
        %v934 = vld [vmem:[#allocation5 + $0xd4] sm:$0xf]
        %v935 = vld [vmem:[#allocation5 + $0xd8] sm:$0xf]
        %v936 = vld [vmem:[#allocation5 + $0xdc] sm:$0xf]
        %v937 = vld [vmem:[#allocation5 + $0xe0] sm:$0xf]
        %v938 = vld [vmem:[#allocation5 + $0xe4] sm:$0xf]
        %v939 = vld [vmem:[#allocation5 + $0xe8] sm:$0xf]
        %v940 = vld [vmem:[#allocation5 + $0xec] sm:$0xf]
        %v941 = vld [vmem:[#allocation5 + $0xf0] sm:$0xf]
        %v942 = vld [vmem:[#allocation5 + $0xf4] sm:$0xf]
        %v943 = vld [vmem:[#allocation5 + $0xf8] sm:$0xf]
        %v944 = vld [vmem:[#allocation5 + $0xfc] sm:$0xf]
        %v945 = vld [vmem:[%s4] sm:$0x1]
        %v947 = vlaneseq
        %v948 = vshrl.u32 %v947, 7
        %v949 = vsub.s32 0, %v948
        %v950 = vrot.slane %v945, %v949
        %v1016 = vunpack.c.l.b16 %v881
        %v1017 = vunpack.c.l.b16 %v882
        %v1018 = vunpack.c.l.b16 %v883
        %v1019 = vunpack.c.l.b16 %v884
        %v1020 = vunpack.c.l.b16 %v885
        %v1021 = vunpack.c.l.b16 %v886
        %v1022 = vunpack.c.l.b16 %v887
        %v1023 = vunpack.c.l.b16 %v888
        %v1024 = vunpack.c.l.b16 %v889
        %v1025 = vunpack.c.l.b16 %v890
        %v1026 = vunpack.c.l.b16 %v891
        %v1027 = vunpack.c.l.b16 %v892
        %v1028 = vunpack.c.l.b16 %v893
        %v1029 = vunpack.c.l.b16 %v894
        %v1030 = vunpack.c.l.b16 %v895
        %v1031 = vunpack.c.l.b16 %v896
        %v1032 = vunpack.c.l.b16 %v897
        %v1033 = vunpack.c.l.b16 %v898
        %v1034 = vunpack.c.l.b16 %v899
        %v1035 = vunpack.c.l.b16 %v900
        %v1036 = vunpack.c.l.b16 %v901
        %v1037 = vunpack.c.l.b16 %v902
        %v1038 = vunpack.c.l.b16 %v903
        %v1039 = vunpack.c.l.b16 %v904
        %v1040 = vunpack.c.l.b16 %v905
        %v1041 = vunpack.c.l.b16 %v906
        %v1042 = vunpack.c.l.b16 %v907
        %v1043 = vunpack.c.l.b16 %v908
        %v1044 = vunpack.c.l.b16 %v909
        %v1045 = vunpack.c.l.b16 %v910
        %v1046 = vunpack.c.l.b16 %v911
        %v1047 = vunpack.c.l.b16 %v912
        %v1048 = vunpack.c.l.b16 %v913
        %v1049 = vunpack.c.l.b16 %v914
        %v1050 = vunpack.c.l.b16 %v915
        %v1051 = vunpack.c.l.b16 %v916
        %v1052 = vunpack.c.l.b16 %v917
        %v1053 = vunpack.c.l.b16 %v918
        %v1054 = vunpack.c.l.b16 %v919
        %v1055 = vunpack.c.l.b16 %v920
        %v1056 = vunpack.c.l.b16 %v921
        %v1057 = vunpack.c.l.b16 %v922
        %v1058 = vunpack.c.l.b16 %v923
        %v1059 = vunpack.c.l.b16 %v924
        %v1060 = vunpack.c.l.b16 %v925
        %v1061 = vunpack.c.l.b16 %v926
        %v1062 = vunpack.c.l.b16 %v927
        %v1063 = vunpack.c.l.b16 %v928
        %v1064 = vunpack.c.l.b16 %v929
        %v1065 = vunpack.c.l.b16 %v930
        %v1066 = vunpack.c.l.b16 %v931
        %v1067 = vunpack.c.l.b16 %v932
        %v1068 = vunpack.c.l.b16 %v933
        %v1069 = vunpack.c.l.b16 %v934
        %v1070 = vunpack.c.l.b16 %v935
        %v1071 = vunpack.c.l.b16 %v936
        %v1072 = vunpack.c.l.b16 %v937
        %v1073 = vunpack.c.l.b16 %v938
        %v1074 = vunpack.c.l.b16 %v939
        %v1075 = vunpack.c.l.b16 %v940
        %v1076 = vunpack.c.l.b16 %v941
        %v1077 = vunpack.c.l.b16 %v942
        %v1078 = vunpack.c.l.b16 %v943
        %v1079 = vunpack.c.l.b16 %v944
        %v1080 = vpack.c.b16 %v1017, %v1016
        %v1081 = vpack.c.b16 %v1019, %v1018
        %v1082 = vpack.c.b16 %v1021, %v1020
        %v1083 = vpack.c.b16 %v1023, %v1022
        %v1084 = vpack.c.b16 %v1025, %v1024
        %v1085 = vpack.c.b16 %v1027, %v1026
        %v1086 = vpack.c.b16 %v1029, %v1028
        %v1087 = vpack.c.b16 %v1031, %v1030
        %v1088 = vpack.c.b16 %v1033, %v1032
        %v1089 = vpack.c.b16 %v1035, %v1034
        %v1090 = vpack.c.b16 %v1037, %v1036
        %v1091 = vpack.c.b16 %v1039, %v1038
        %v1092 = vpack.c.b16 %v1041, %v1040
        %v1093 = vpack.c.b16 %v1043, %v1042
        %v1094 = vpack.c.b16 %v1045, %v1044
        %v1095 = vpack.c.b16 %v1047, %v1046
        %v1096 = vpack.c.b16 %v1049, %v1048
        %v1097 = vpack.c.b16 %v1051, %v1050
        %v1098 = vpack.c.b16 %v1053, %v1052
        %v1099 = vpack.c.b16 %v1055, %v1054
        %v1100 = vpack.c.b16 %v1057, %v1056
        %v1101 = vpack.c.b16 %v1059, %v1058
        %v1102 = vpack.c.b16 %v1061, %v1060
        %v1103 = vpack.c.b16 %v1063, %v1062
        %v1104 = vpack.c.b16 %v1065, %v1064
        %v1105 = vpack.c.b16 %v1067, %v1066
        %v1106 = vpack.c.b16 %v1069, %v1068
        %v1107 = vpack.c.b16 %v1071, %v1070
        %v1108 = vpack.c.b16 %v1073, %v1072
        %v1109 = vpack.c.b16 %v1075, %v1074
        %v1110 = vpack.c.b16 %v1077, %v1076
        %v1111 = vpack.c.b16 %v1079, %v1078
        %1144 = vmatprep.subr.bf16.mxu0 0
        %1145 = vmatpush1.bf16.msra.mxu0 %v1080
        %1146 = vmatprep.subr.bf16.mxu0 0
        %1147 = vmatpush1.bf16.msra.mxu0 %v1081
        %1148 = vmatprep.subr.bf16.mxu0 0
        %1149 = vmatpush1.bf16.msra.mxu0 %v1082
        %1150 = vmatprep.subr.bf16.mxu0 0
        %1151 = vmatpush1.bf16.msra.mxu0 %v1083
        %1152 = vmatprep.subr.bf16.mxu0 0
        %1153 = vmatpush1.bf16.msra.mxu0 %v1084
        %1154 = vmatprep.subr.bf16.mxu0 0
        %1155 = vmatpush1.bf16.msra.mxu0 %v1085
        %1156 = vmatprep.subr.bf16.mxu0 0
        %1157 = vmatpush1.bf16.msra.mxu0 %v1086
        %1158 = vmatprep.subr.bf16.mxu0 0
        %1159 = vmatpush1.bf16.msra.mxu0 %v1087
        %1160 = vmatprep.subr.bf16.mxu0 0
        %1161 = vmatpush1.bf16.msra.mxu0 %v1088
        %1162 = vmatprep.subr.bf16.mxu0 0
        %1163 = vmatpush1.bf16.msra.mxu0 %v1089
        %1164 = vmatprep.subr.bf16.mxu0 0
        %1165 = vmatpush1.bf16.msra.mxu0 %v1090
        %1166 = vmatprep.subr.bf16.mxu0 0
        %1167 = vmatpush1.bf16.msra.mxu0 %v1091
        %1168 = vmatprep.subr.bf16.mxu0 0
        %1169 = vmatpush1.bf16.msra.mxu0 %v1092
        %1170 = vmatprep.subr.bf16.mxu0 0
        %1171 = vmatpush1.bf16.msra.mxu0 %v1093
        %1172 = vmatprep.subr.bf16.mxu0 0
        %1173 = vmatpush1.bf16.msra.mxu0 %v1094
        %1174 = vmatprep.subr.bf16.mxu0 0
        %1175 = vmatpush1.bf16.msra.mxu0 %v1095
        %1176 = vmatprep.mubr.bf16.mxu0 %v878
        %1177 = vmatmul.mubr.bf16.gmra.mrb[0].mxu0 %v877
        %v1178 = vpop.f32.mrb[0].mxu0
        %v1179 = vadd.f32 %v950, %v1178
        %v1180 = vpop.f32.mrb[0].mxu0
        %v1181 = vpop.f32.mrb[0].mxu0
        %v1182 = vpop.f32.mrb[0].mxu0
        %1183 = vdwg.mxu0
        %1184 = vmatprep.subr.bf16.mxu0 0
        %1185 = vmatpush1.bf16.msra.mxu0 %v1096
        %1186 = vmatprep.subr.bf16.mxu0 0
        %1187 = vmatpush1.bf16.msra.mxu0 %v1097
        %1188 = vmatprep.subr.bf16.mxu0 0
        %1189 = vmatpush1.bf16.msra.mxu0 %v1098
        %1190 = vmatprep.subr.bf16.mxu0 0
        %1191 = vmatpush1.bf16.msra.mxu0 %v1099
        %1192 = vmatprep.subr.bf16.mxu0 0
        %1193 = vmatpush1.bf16.msra.mxu0 %v1100
        %1194 = vmatprep.subr.bf16.mxu0 0
        %1195 = vmatpush1.bf16.msra.mxu0 %v1101
        %1196 = vmatprep.subr.bf16.mxu0 0
        %1197 = vmatpush1.bf16.msra.mxu0 %v1102
        %1198 = vmatprep.subr.bf16.mxu0 0
        %1199 = vmatpush1.bf16.msra.mxu0 %v1103
        %1200 = vmatprep.subr.bf16.mxu0 0
        %1201 = vmatpush1.bf16.msra.mxu0 %v1104
        %1202 = vmatprep.subr.bf16.mxu0 0
        %1203 = vmatpush1.bf16.msra.mxu0 %v1105
        %1204 = vmatprep.subr.bf16.mxu0 0
        %1205 = vmatpush1.bf16.msra.mxu0 %v1106
        %1206 = vmatprep.subr.bf16.mxu0 0
        %1207 = vmatpush1.bf16.msra.mxu0 %v1107
        %1208 = vmatprep.subr.bf16.mxu0 0
        %1209 = vmatpush1.bf16.msra.mxu0 %v1108
        %1210 = vmatprep.subr.bf16.mxu0 0
        %1211 = vmatpush1.bf16.msra.mxu0 %v1109
        %1212 = vmatprep.subr.bf16.mxu0 0
        %1213 = vmatpush1.bf16.msra.mxu0 %v1110
        %1214 = vmatprep.subr.bf16.mxu0 0
        %1215 = vmatpush1.bf16.msra.mxu0 %v1111
        %1216 = vmatprep.mubr.bf16.mxu0 %v880
        %1217 = vmatmul.mubr.bf16.gmra.mrb[0].mxu0 %v879
        %v1218 = vpop.f32.mrb[0].mxu0
        %v1219 = vadd.f32 %v1179, %v1218
        %v1220 = vpop.f32.mrb[0].mxu0
        %v1221 = vpop.f32.mrb[0].mxu0
        %v1222 = vpop.f32.mrb[0].mxu0
        %1223 = vdwg.mxu0
        %vm1224 = vcmp.lt.s32.totalorder %v305, 8
        %v1225 = vsel %vm1224, %v1219, -1e+30
        %1226 = vmax.xlane.f32.xlu0 %v1225
        %v1227 = vpop.xlane.xlu0 %1226
        %v1228 = vsub.f32 %v1225, %v1227
        %v1229 = vmul.f32 %v1228, 1.442695
        %v1230 = vpow.pop %v1229
        %1231 = vadd.xlane.f32.xlu0 %v1230
        %v1232 = vpop.xlane.xlu0 %1231
        %v1233 = vrcp.pop %v1232
        %v1234 = vmul.f32 %v1230, %v1233
        %1235 = vst [vmem:[%s283] sm:$0xff] %v1234
        %s1236 = sand.u32 %s151, 1
        %s1237 = scalar_lea.sflag [#allocation4], %s1236
        %s1238 = sand.u32 %s151, 1
        %s1239 = smul.addr %s1238, 8
        %s1240 = scalar_lea.vmem [#allocation7], %s1239
        // Predicated region
        $region49: #{tpu_custom_call.1} parent=39 // pred_check
          %p1241 = pneg %p161
        $region50: #{tpu_custom_call.1} parent=39 // pred_check_branch
          %1243 = sbr.rel (%p1241) target = $region52
        $region51: #{tpu_custom_call.1} parent=39 // pred_region
          %s1245 = ssub.s32 128, 128
          %1246 = vsyncadd %s1237, %s1245
          %s1247 = smul.addr %s23, 128
          %s1248 = scalar_lea.hbm %s5, %s1247
          %s1250 = sshll.u32 %s1240, 4
          %s1251 = int_to_ptr.vmem [resolvable:$true] %s1250
          %1253 = dma.vmem_to_hbm [thread:$0]  %s1251, 128, %s1248, %s1237
        $region52: #{tpu_custom_call.1} parent=39 // pred_fallthru
          _
      $region40: #{tpu_custom_call.1} parent=5 // pred_fallthru
        _
      %p1254 = scmp.le.s32.totalorder 2, %s18
      // Predicated region
      $region53: #{tpu_custom_call.1} parent=5 // pred_check
        %p1255 = pneg %p1254
      $region54: #{tpu_custom_call.1} parent=5 // pred_check_branch
        %1257 = sbr.rel (%p1255) target = $region56
      $region55: #{tpu_custom_call.1} parent=5 // pred_region
        %s1258 = ssub.s32 %s18, 2
        // Predicated region
        $region57: #{tpu_custom_call.1} parent=55 // pred_check
          %p1259 = pneg %p167
        $region58: #{tpu_custom_call.1} parent=55 // pred_check_branch
          %1261 = sbr.rel (%p1259) target = $region60
        $region59: #{tpu_custom_call.1} parent=55 // pred_region
          %s1262 = sand.u32 %s152, 1
          %s1263 = scalar_lea.sflag [#allocation4], %s1262
          %s1264 = sand.u32 %s152, 1
          %s1265 = smul.addr %s1264, 8
          %s1266 = scalar_lea.vmem [#allocation7], %s1265
          %1267 = dma.done %s1263, 128
        $region60: #{tpu_custom_call.1} parent=55 // pred_fallthru
          _
      $region56: #{tpu_custom_call.1} parent=5 // pred_fallthru
        _
    $region6: #{tpu_custom_call.1} parent=1 // loop_footer
      %s22 = sadd.s32 1, %s18
    $region7: #{tpu_custom_call.1} parent=1 // loop_footer_branch
      %17 = sbr.rel target = $region3
    $region8: #{tpu_custom_call.1} parent=1 // loop_exit
      _
    %1268 = vsyncpa [#allocation3], 1
    %s1269 = scalar_lea.sflag [#allocation3], 1
    %1270 = vsyncpa %s1269, 1
    %1271 = vsyncpa [#allocation6], 1
    %1272 = vsyncpa [#allocation4], 1
    %s1273 = scalar_lea.sflag [#allocation4], 1
    %1274 = vsyncpa %s1273, 1

</llo_original>
